<compile_context>
chip_gen: v6e
topology: v6e:2x2x1
jax: 0.10.0
libtpu: 0.0.40
codegen_flags: <defaults>
</compile_context>

<pallas_src>
import jax
import jax.numpy as jnp
from jax import lax
from jax.experimental import pallas as pl
from jax.experimental.pallas import tpu as pltpu
import numpy as np


# ---------------------------------------------------------------------------
# Kernel 1: fused transposed-conv matmul (all 4 sub-pixel phases at once)
#           + per-sample channel statistics (sum, sum of squares)
# ---------------------------------------------------------------------------
def _convt_stats_kernel(p_ref, w_ref, y_ref, s_ref, sq_ref):
    # p_ref:  (1, 9*Cin, H*W)   3x3-halo im2col of the padded input (lane-dense)
    # w_ref:  (4*Cout, 9*Cin)   packed phase weights
    # y_ref:  (1, 4*Cout, H*W)  pre-pixel-shuffle conv-transpose output
    # s_ref:  (1, 4*Cout, 1)    per-sample sum per (phase, out-channel) row
    # sq_ref: (1, 4*Cout, 1)    per-sample sum of squares per row
    p = p_ref[0]                                                   # (9*Cin, HW)
    y = jnp.dot(w_ref[...], p, preferred_element_type=jnp.float32)  # (4*Cout, HW)
    y_ref[0] = y.astype(y_ref.dtype)
    s_ref[0] = jnp.sum(y, axis=1, keepdims=True)
    sq_ref[0] = jnp.sum(y * y, axis=1, keepdims=True)


# ---------------------------------------------------------------------------
# Kernel 2: batch-norm affine + ReLU on the lane-dense slab
# ---------------------------------------------------------------------------
def _bn_relu_kernel(y_ref, scale_ref, shift_ref, o_ref):
    # y_ref / o_ref: (1, 4*Cout, H*W);  scale / shift: (4*Cout, 1)
    y = y_ref[0]
    o_ref[0] = jnp.maximum(y * scale_ref[...] + shift_ref[...], 0.0).astype(o_ref.dtype)


# ---------------------------------------------------------------------------
# Wrapper
# ---------------------------------------------------------------------------
def upsample_block(x_nchw, w_pt, gamma, beta, eps=1e-5):
    """x_nchw: (N, Cin, H, W); w_pt: (Cin, Cout, 4, 4) (PyTorch ConvTranspose2d)."""
    N, Cin, H, W = x_nchw.shape
    Cout = w_pt.shape[1]
    Ho, Wo = 2 * H, 2 * W
    HW = H * W

    xf = x_nchw.astype(jnp.float32)
    wf = w_pt.astype(jnp.float32)

    # --- glue: 1-pixel halo pad + 3x3 im2col (no zero-dilation) ------------
    x_pad = jnp.pad(xf, ((0, 0), (0, 0), (1, 1), (1, 1)))   # (N, Cin, H+2, W+2)
    cols = [x_pad[:, :, dh:dh + H, dw:dw + W]
            for dh in range(3) for dw in range(3)]          # 9 x (N, Cin, H, W)
    patches = jnp.stack(cols, axis=1).reshape(N, 9 * Cin, HW)   # lane axis = H*W

    # --- glue: pack weights to (4*Cout, 9*Cin) ------------------------------
    # row r = (rh*2 + rw)*Cout + oc addresses output pixel (2*ih + rh, 2*iw + rw);
    # col c = (dh*3 + dw)*Cin + ic addresses x_pad[ih+dh, iw+dw];
    # the used kernel tap is kh = rh - 2*dh + 3 (and likewise for kw).
    KH = {0: {0: 3, 1: 1}, 1: {1: 2, 2: 0}}
    w_packed = jnp.zeros((4 * Cout, 9 * Cin), jnp.float32)
    for rh in (0, 1):
        for rw in (0, 1):
            p = rh * 2 + rw
            for dh, kh in KH[rh].items():
                for dw, kw in KH[rw].items():
                    blk = wf[:, :, kh, kw].T            # (Cout, Cin)
                    c0 = (dh * 3 + dw) * Cin
                    w_packed = w_packed.at[p * Cout:(p + 1) * Cout,
                                           c0:c0 + Cin].set(blk)

    # --- Pallas call 1: fused conv-transpose matmul + per-sample stats ------
    y, s_part, sq_part = pl.pallas_call(
        _convt_stats_kernel,
        out_shape=(
            jax.ShapeDtypeStruct((N, 4 * Cout, HW), jnp.float32),
            jax.ShapeDtypeStruct((N, 4 * Cout, 1), jnp.float32),
            jax.ShapeDtypeStruct((N, 4 * Cout, 1), jnp.float32),
        ),
        grid_spec=pltpu.PrefetchScalarGridSpec(
            num_scalar_prefetch=0,
            grid=(N,),
            in_specs=[
                pl.BlockSpec((1, 9 * Cin, HW), lambda n: (n, 0, 0)),
                pl.BlockSpec((4 * Cout, 9 * Cin), lambda n: (0, 0)),
            ],
            out_specs=[
                pl.BlockSpec((1, 4 * Cout, HW), lambda n: (n, 0, 0)),
                pl.BlockSpec((1, 4 * Cout, 1), lambda n: (n, 0, 0)),
                pl.BlockSpec((1, 4 * Cout, 1), lambda n: (n, 0, 0)),
            ],
        ),
        compiler_params=pltpu.CompilerParams(
            dimension_semantics=("parallel",)),
    )(patches, w_packed)

    # --- glue: finalize batch statistics (training BatchNorm, biased var) ---
    s_tot = jnp.sum(s_part, axis=(0, 2)).reshape(4, Cout).sum(axis=0)    # (Cout,)
    sq_tot = jnp.sum(sq_part, axis=(0, 2)).reshape(4, Cout).sum(axis=0)  # (Cout,)
    count = N * Ho * Wo
    mean = s_tot / count
    var = sq_tot / count - mean * mean
    scale = gamma.astype(jnp.float32) / jnp.sqrt(var + eps)              # (Cout,)
    shift = beta.astype(jnp.float32) - mean * scale
    scale_rows = jnp.tile(scale, 4).reshape(4 * Cout, 1)   # row r -> scale[oc]
    shift_rows = jnp.tile(shift, 4).reshape(4 * Cout, 1)

    # --- Pallas call 2: BN affine + ReLU (in place over the intermediate) ---
    out_pre = pl.pallas_call(
        _bn_relu_kernel,
        out_shape=jax.ShapeDtypeStruct((N, 4 * Cout, HW), jnp.float32),
        grid_spec=pltpu.PrefetchScalarGridSpec(
            num_scalar_prefetch=0,
            grid=(N,),
            in_specs=[
                pl.BlockSpec((1, 4 * Cout, HW), lambda n: (n, 0, 0)),
                pl.BlockSpec((4 * Cout, 1), lambda n: (0, 0)),
                pl.BlockSpec((4 * Cout, 1), lambda n: (0, 0)),
            ],
            out_specs=pl.BlockSpec((1, 4 * Cout, HW), lambda n: (n, 0, 0)),
        ),
        compiler_params=pltpu.CompilerParams(
            dimension_semantics=("parallel",)),
        input_output_aliases={0: 0},
    )(y, scale_rows, shift_rows)

    # --- glue: pixel-shuffle the 4 phases back to NCHW -----------------------
    out = out_pre.reshape(N, 2, 2, Cout, H, W)           # (n, rh, rw, oc, ih, iw)
    out = jnp.transpose(out, (0, 3, 4, 1, 5, 2))         # (n, oc, ih, rh, iw, rw)
    return out.reshape(N, Cout, Ho, Wo)


# ---------------------------------------------------------------------------
# Pure-JAX reference (independent code path via lax.conv_general_dilated)
# ---------------------------------------------------------------------------
def upsample_block_ref(x_nchw, w_pt, gamma, beta, eps=1e-5):
    w_oihw = jnp.transpose(w_pt[:, :, ::-1, ::-1], (1, 0, 2, 3))
    y = lax.conv_general_dilated(
        x_nchw.astype(jnp.float32), w_oihw.astype(jnp.float32),
        window_strides=(1, 1), padding=[(2, 2), (2, 2)],
        lhs_dilation=(2, 2),
        dimension_numbers=("NCHW", "OIHW", "NCHW"))
    mean = jnp.mean(y, axis=(0, 2, 3), keepdims=True)
    var = jnp.mean((y - mean) ** 2, axis=(0, 2, 3), keepdims=True)  # biased
    yn = (y - mean) / jnp.sqrt(var + eps)
    yn = yn * gamma.reshape(1, -1, 1, 1) + beta.reshape(1, -1, 1, 1)
    return jnp.maximum(yn, 0.0)


if __name__ == "__main__":
    key = jax.random.PRNGKey(0)
    kx, kw, kg, kb = jax.random.split(key, 4)

    N, Cin, H, W = 2, 4, 16, 16
    Cout = Cin // 2           # out_channel = int(in_channel * 0.5)

    x = jax.random.normal(kx, (N, Cin, H, W), jnp.float32)
    w = jax.random.normal(kw, (Cin, Cout, 4, 4), jnp.float32) * 0.1
    gamma = 1.0 + 0.1 * jax.random.normal(kg, (Cout,), jnp.float32)
    beta = 0.1 * jax.random.normal(kb, (Cout,), jnp.float32)

    fn = jax.jit(upsample_block)
    out = jax.block_until_ready(fn(x, w, gamma, beta))

    ref = upsample_block_ref(x, w, gamma, beta)
    np.testing.assert_allclose(np.asarray(out), np.asarray(ref),
                               rtol=2e-4, atol=2e-4)
    assert out.shape == (N, Cout, 2 * H, 2 * W)
    print("KERNEL_OK")
</pallas_src>

<mosaic_0001>
module attributes {stable_mosaic.version = 11 : i64} {
  func.func @_convt_stats_kernel(%arg0: i32, %arg1: memref<1x36x256xf32, #tpu.memory_space<vmem>>, %arg2: memref<8x36xf32, #tpu.memory_space<vmem>>, %arg3: memref<1x8x256xf32, #tpu.memory_space<vmem>>, %arg4: memref<1x8x1xf32, #tpu.memory_space<vmem>>, %arg5: memref<1x8x1xf32, #tpu.memory_space<vmem>>) attributes {dimension_semantics = [#tpu.dimension_semantics<parallel>], iteration_bounds = array<i64: 2>, scalar_prefetch = 0 : i64, scratch_operands = 0 : i64, tpu.core_type = #tpu.core_type<tc>, window_params = [{transform_indices = @transform_0, window_bounds = array<i64: 1, 36, 256>}, {pipeline_mode = #tpu.pipeline_mode<synchronous>, transform_indices = @transform_1, window_bounds = array<i64: 8, 36>}, {transform_indices = @transform_2, window_bounds = array<i64: 1, 8, 256>}, {transform_indices = @transform_3, window_bounds = array<i64: 1, 8, 1>}, {transform_indices = @transform_4, window_bounds = array<i64: 1, 8, 1>}]} {
    %c0 = arith.constant 0 : index
    %c0_0 = arith.constant 0 : index
    %c0_1 = arith.constant 0 : index
    %0 = vector.load %arg1[%c0, %c0_0, %c0_1] : memref<1x36x256xf32, #tpu.memory_space<vmem>>, vector<1x36x256xf32>
    %1 = vector.shape_cast %0 : vector<1x36x256xf32> to vector<36x256xf32>
    %c0_2 = arith.constant 0 : index
    %c0_3 = arith.constant 0 : index
    %2 = vector.load %arg2[%c0_2, %c0_3] : memref<8x36xf32, #tpu.memory_space<vmem>>, vector<8x36xf32>
    %cst = arith.constant dense<0.000000e+00> : vector<8x256xf32>
    %3 = tpu.matmul %2, %1, %cst {dimension_numbers = #tpu.dot_dimension_numbers<[1], [0], [0], [1], [0, 0, 1, 1], [], []>} : vector<8x36xf32>, vector<36x256xf32>, vector<8x256xf32> -> vector<8x256xf32>
    %c0_4 = arith.constant 0 : index
    %c0_5 = arith.constant 0 : index
    %c0_6 = arith.constant 0 : index
    %4 = vector.load %arg3[%c0_4, %c0_5, %c0_6] : memref<1x8x256xf32, #tpu.memory_space<vmem>>, vector<1x8x256xf32>
    %5 = vector.shape_cast %4 : vector<1x8x256xf32> to vector<8x256xf32>
    %6 = vector.shape_cast %3 : vector<8x256xf32> to vector<1x8x256xf32>
    tpu.vector_store %arg3[%c0_4, %c0_5, %c0_6], %6 {strides = array<i32>} : memref<1x8x256xf32, #tpu.memory_space<vmem>>, vector<1x8x256xf32>,
    %cst_7 = arith.constant dense<0.000000e+00> : vector<8xf32>
    %7 = vector.multi_reduction <add>, %3, %cst_7 [1] : vector<8x256xf32> to vector<8xf32>
    %8 = vector.shape_cast %7 : vector<8xf32> to vector<8x1xf32>
    %c0_8 = arith.constant 0 : index
    %c0_9 = arith.constant 0 : index
    %c0_10 = arith.constant 0 : index
    %9 = vector.load %arg4[%c0_8, %c0_9, %c0_10] : memref<1x8x1xf32, #tpu.memory_space<vmem>>, vector<1x8x1xf32>
    %10 = vector.shape_cast %9 : vector<1x8x1xf32> to vector<8x1xf32>
    %11 = vector.shape_cast %8 : vector<8x1xf32> to vector<1x8x1xf32>
    tpu.vector_store %arg4[%c0_8, %c0_9, %c0_10], %11 {strides = array<i32>} : memref<1x8x1xf32, #tpu.memory_space<vmem>>, vector<1x8x1xf32>,
    %12 = arith.mulf %3, %3 : vector<8x256xf32>
    %cst_11 = arith.constant dense<0.000000e+00> : vector<8xf32>
    %13 = vector.multi_reduction <add>, %12, %cst_11 [1] : vector<8x256xf32> to vector<8xf32>
    %14 = vector.shape_cast %13 : vector<8xf32> to vector<8x1xf32>
    %c0_12 = arith.constant 0 : index
    %c0_13 = arith.constant 0 : index
    %c0_14 = arith.constant 0 : index
    %15 = vector.load %arg5[%c0_12, %c0_13, %c0_14] : memref<1x8x1xf32, #tpu.memory_space<vmem>>, vector<1x8x1xf32>
    %16 = vector.shape_cast %15 : vector<1x8x1xf32> to vector<8x1xf32>
    %17 = vector.shape_cast %14 : vector<8x1xf32> to vector<1x8x1xf32>
    tpu.vector_store %arg5[%c0_12, %c0_13, %c0_14], %17 {strides = array<i32>} : memref<1x8x1xf32, #tpu.memory_space<vmem>>, vector<1x8x1xf32>,
    return
  }
  func.func @transform_0(%arg0: i32) -> (i32, i32, i32) {
    %c0_i32 = arith.constant 0 : i32
    %c0_i32_0 = arith.constant 0 : i32
    %c0_i32_1 = arith.constant 0 : i32
    return %arg0, %c0_i32, %c0_i32_0 : i32, i32, i32
  }
  func.func @transform_1(%arg0: i32) -> (i32, i32) {
    %c0_i32 = arith.constant 0 : i32
    %c0_i32_0 = arith.constant 0 : i32
    %c0_i32_1 = arith.constant 0 : i32
    return %c0_i32, %c0_i32_0 : i32, i32
  }
  func.func @transform_2(%arg0: i32) -> (i32, i32, i32) {
    %c0_i32 = arith.constant 0 : i32
    %c0_i32_0 = arith.constant 0 : i32
    %c0_i32_1 = arith.constant 0 : i32
    return %arg0, %c0_i32, %c0_i32_0 : i32, i32, i32
  }
  func.func @transform_3(%arg0: i32) -> (i32, i32, i32) {
    %c0_i32 = arith.constant 0 : i32
    %c0_i32_0 = arith.constant 0 : i32
    %c0_i32_1 = arith.constant 0 : i32
    return %arg0, %c0_i32, %c0_i32_0 : i32, i32, i32
  }
  func.func @transform_4(%arg0: i32) -> (i32, i32, i32) {
    %c0_i32 = arith.constant 0 : i32
    %c0_i32_0 = arith.constant 0 : i32
    %c0_i32_1 = arith.constant 0 : i32
    return %arg0, %c0_i32, %c0_i32_0 : i32, i32, i32
  }
}

module attributes {stable_mosaic.version = 11 : i64} {
  func.func @_bn_relu_kernel(%arg0: i32, %arg1: memref<1x8x256xf32, #tpu.memory_space<vmem>>, %arg2: memref<8x1xf32, #tpu.memory_space<vmem>>, %arg3: memref<8x1xf32, #tpu.memory_space<vmem>>, %arg4: memref<1x8x256xf32, #tpu.memory_space<vmem>>) attributes {dimension_semantics = [#tpu.dimension_semantics<parallel>], iteration_bounds = array<i64: 2>, scalar_prefetch = 0 : i64, scratch_operands = 0 : i64, tpu.core_type = #tpu.core_type<tc>, window_params = [{transform_indices = @transform_0, window_bounds = array<i64: 1, 8, 256>}, {pipeline_mode = #tpu.pipeline_mode<synchronous>, transform_indices = @transform_1, window_bounds = array<i64: 8, 1>}, {pipeline_mode = #tpu.pipeline_mode<synchronous>, transform_indices = @transform_2, window_bounds = array<i64: 8, 1>}, {transform_indices = @transform_3, window_bounds = array<i64: 1, 8, 256>}]} {
    %c0 = arith.constant 0 : index
    %c0_0 = arith.constant 0 : index
    %c0_1 = arith.constant 0 : index
    %0 = vector.load %arg1[%c0, %c0_0, %c0_1] : memref<1x8x256xf32, #tpu.memory_space<vmem>>, vector<1x8x256xf32>
    %1 = vector.shape_cast %0 : vector<1x8x256xf32> to vector<8x256xf32>
    %c0_2 = arith.constant 0 : index
    %c0_3 = arith.constant 0 : index
    %2 = vector.load %arg2[%c0_2, %c0_3] : memref<8x1xf32, #tpu.memory_space<vmem>>, vector<8x1xf32>
    %3 = vector.broadcast %2 : vector<8x1xf32> to vector<8x256xf32>
    %4 = arith.mulf %1, %3 : vector<8x256xf32>
    %c0_4 = arith.constant 0 : index
    %c0_5 = arith.constant 0 : index
    %5 = vector.load %arg3[%c0_4, %c0_5] : memref<8x1xf32, #tpu.memory_space<vmem>>, vector<8x1xf32>
    %6 = vector.broadcast %5 : vector<8x1xf32> to vector<8x256xf32>
    %7 = arith.addf %4, %6 : vector<8x256xf32>
    %cst = arith.constant 0.000000e+00 : f32
    %8 = vector.broadcast %cst : f32 to vector<8x256xf32>
    %9 = arith.maximumf %7, %8 : vector<8x256xf32>
    %c0_6 = arith.constant 0 : index
    %c0_7 = arith.constant 0 : index
    %c0_8 = arith.constant 0 : index
    %10 = vector.load %arg4[%c0_6, %c0_7, %c0_8] : memref<1x8x256xf32, #tpu.memory_space<vmem>>, vector<1x8x256xf32>
    %11 = vector.shape_cast %10 : vector<1x8x256xf32> to vector<8x256xf32>
    %12 = vector.shape_cast %9 : vector<8x256xf32> to vector<1x8x256xf32>
    tpu.vector_store %arg4[%c0_6, %c0_7, %c0_8], %12 {strides = array<i32>} : memref<1x8x256xf32, #tpu.memory_space<vmem>>, vector<1x8x256xf32>,
    return
  }
  func.func @transform_0(%arg0: i32) -> (i32, i32, i32) {
    %c0_i32 = arith.constant 0 : i32
    %c0_i32_0 = arith.constant 0 : i32
    %c0_i32_1 = arith.constant 0 : i32
    return %arg0, %c0_i32, %c0_i32_0 : i32, i32, i32
  }
  func.func @transform_1(%arg0: i32) -> (i32, i32) {
    %c0_i32 = arith.constant 0 : i32
    %c0_i32_0 = arith.constant 0 : i32
    %c0_i32_1 = arith.constant 0 : i32
    return %c0_i32, %c0_i32_0 : i32, i32
  }
  func.func @transform_2(%arg0: i32) -> (i32, i32) {
    %c0_i32 = arith.constant 0 : i32
    %c0_i32_0 = arith.constant 0 : i32
    %c0_i32_1 = arith.constant 0 : i32
    return %c0_i32, %c0_i32_0 : i32, i32
  }
  func.func @transform_3(%arg0: i32) -> (i32, i32, i32) {
    %c0_i32 = arith.constant 0 : i32
    %c0_i32_0 = arith.constant 0 : i32
    %c0_i32_1 = arith.constant 0 : i32
    return %arg0, %c0_i32, %c0_i32_0 : i32, i32, i32
  }
}

</mosaic_0001>

<llo_original>
// kernel: tile.0
$region0: #{tile.0}
  %s0 = inlined_call_operand.vmem [shape: f32[4,2], index: 0, kind: input, shape index: {}]
  %s1 = inlined_call_operand.vmem [shape: f32[8,1], index: 1, kind: output, shape index: {}]
  $region1: #{tile.0} parent=0
    #allocation0 [shape = 'u8[4096]{0}', space=vmem, size = 0x1000, scoped, tag = 'scoped mem for input reshape']
    %s3 = sshll.u32 1, 4
    %s4 = ssub.s32 %s3, 1
    %v5 = vld [vmem:[%s0] sm:%s4]
    %6 = vst [vmem:[#allocation0] sm:%s4] %v5
    %v7 = vld [vmem:[#allocation0] sm:$0xf]
    %vm8 = vcmask 7168
    %9 = vst.msk [vmem:[%s1] ss:$2 sm:$0xf] %vm8, %v7
    %v10 = vld [vmem:[#allocation0] sm:$0xf]
    %11 = vrot.lane.b32.xlu0 %v10, 127
    %v12 = vpop.permute.xlu0 %11
    %vm13 = vcmask 7168
    %s14 = scalar_lea.vmem %s1, 1
    %15 = vst.msk [vmem:[%s14] ss:$2 sm:$0xf] %vm13, %v12

// kernel: tile.13
$region0: #{tile.13}
  #allocation0 [shape = 's32[1]{0}', space=sflag, size = 0x4, scoped, tag = 'scoped memory for tile.13']
  %s0 = inlined_call_operand.vmem [shape: f32[2], index: 0, kind: input, shape index: {}]
  %s1 = inlined_call_operand.vmem [shape: f32[4,2], index: 1, kind: output, shape index: {}]
  // Predicated region
  $region2: #{tile.13} parent=0 // pred_check
    _
  $region3: #{tile.13} parent=0 // pred_check_branch
    %3 = sbr.rel (0) target = $region5
  $region4: #{tile.13} parent=0 // pred_region
    _
  $region5: #{tile.13} parent=0 // pred_fallthru
    _
  %v4 = vld [vmem:[%s0] ss:$0 sm:$0xff]
  %5 = vst [vmem:[%s1] sm:$0xf] %v4

// kernel: upsample_block.2
$region0: #{upsample_block.2}
  #allocation0 [shape = 'u32[]', space=smem, size = 0x4, offset = 0x4, fixed_abs, tag = 'smem constant byte address 0x4 - core index']
  #allocation1 [shape = 'u32[144,128]{1,0:T(1,128)}', space=vmem, size = 0x12000, scoped, tag = 'internal scratch']
  %s0 = inlined_call_operand.vmem [shape: f32[2,36,256], index: 0, kind: input, shape index: {}]
  %s1 = inlined_call_operand.vmem [shape: f32[8,36], index: 1, kind: input, shape index: {}]
  %s2 = inlined_call_operand.vmem [shape: f32[2,8,256], index: 2, kind: output, shape index: {0}]
  %s3 = inlined_call_operand.vmem [shape: f32[2,8,1], index: 3, kind: output, shape index: {1}]
  %s4 = inlined_call_operand.vmem [shape: f32[2,8,1], index: 4, kind: output, shape index: {2}]
  %5 = xla_tuple %s2, %s3, %s4
  %s6 = sld [smem:[#allocation0]]
  $region57: #{upsample_block.2} parent=0
    _
  %s8 = ssub.s32 1, %s6
  %s9 = scalar_select 0, %s8, %s6
  loop: start=0, step=1, limit=4
  $region2: #{upsample_block.2} parent=0 // loop_pre_header
    _
  $region3: #{upsample_block.2} parent=0 // loop_header
    %s11 = sphi 0, %s15
    %p12 = scmp.ge.s32.totalorder %s11, 4
    %s21 = sphi 0, %s23
    %s24 = sphi 0, %s21
    %s25 = sphi 0, %s24
    %s41 = sphi 0, %s25
    %s45 = sphi 0, %s45
    %s47 = sphi 0, %s45
    %s48 = sphi 0, %s47
    %s62 = sphi 0, %s48
    %s68 = sphi 0, %s70
    %s71 = sphi 0, %s68
    %s72 = sphi 0, %s71
    %s88 = sphi 0, %s72
    %s94 = sphi 0, %s96
    %s97 = sphi 0, %s94
    %s98 = sphi 0, %s97
    %s114 = sphi 0, %s98
    %s120 = sphi 0, %s122
    %s123 = sphi 0, %s120
    %s124 = sphi 0, %s123
    %s140 = sphi 0, %s124
  $region4: #{upsample_block.2} parent=0 // loop_header_branch
    %14 = sbr.rel (%p12) target = $region8
  $region5: #{upsample_block.2} parent=0 // loop_body
    %s16 = ssub.s32 %s11, 1
    %s17 = ssub.s32 %s11, 2
    %s18 = sadd.s32 %s11, 1
    %s19 = ssub.s32 %s11, %s18
    %p20 = scmp.eq.s32.totalorder %s19, 0
    %s22 = sadd.s32 %s21, 1
    %s23 = scalar_select %p20, %s21, %s22
    %p26 = pneg %p20
    %p27 = scmp.eq.s32.totalorder %s11, 1
    %p28 = por %p26, %p27
    %p29 = scmp.ne.s32.totalorder %s21, %s24
    %p30 = scmp.eq.s32.totalorder %s11, 0
    %p31 = por %p29, %p30
    %p32 = scmp.ne.s32.totalorder %s21, %s24
    %p33 = scmp.eq.s32.totalorder %s16, 1
    %p34 = por %p32, %p33
    %p35 = scmp.ne.s32.totalorder %s24, %s25
    %p36 = scmp.eq.s32.totalorder %s16, 0
    %p37 = por %p35, %p36
    %p38 = scmp.ne.s32.totalorder %s24, %s25
    %p39 = scmp.eq.s32.totalorder %s17, 1
    %p40 = por %p38, %p39
    %p42 = scmp.ne.s32.totalorder %s25, %s41
    %p43 = scmp.eq.s32.totalorder %s17, 0
    %p44 = por %p42, %p43
    %s46 = sadd.s32 %s45, 1
    %p49 = scmp.eq.s32.totalorder %s11, 1
    %p50 = scmp.ne.s32.totalorder %s45, %s47
    %p51 = scmp.eq.s32.totalorder %s11, 0
    %p52 = por %p50, %p51
    %p53 = scmp.ne.s32.totalorder %s45, %s47
    %p54 = scmp.eq.s32.totalorder %s16, 1
    %p55 = por %p53, %p54
    %p56 = scmp.ne.s32.totalorder %s47, %s48
    %p57 = scmp.eq.s32.totalorder %s16, 0
    %p58 = por %p56, %p57
    %p59 = scmp.ne.s32.totalorder %s47, %s48
    %p60 = scmp.eq.s32.totalorder %s17, 1
    %p61 = por %p59, %p60
    %p63 = scmp.ne.s32.totalorder %s48, %s62
    %p64 = scmp.eq.s32.totalorder %s17, 0
    %p65 = por %p63, %p64
    %s66 = ssub.s32 %s11, %s18
    %p67 = scmp.eq.s32.totalorder %s66, 0
    %s69 = sadd.s32 %s68, 1
    %s70 = scalar_select %p67, %s68, %s69
    %p73 = pneg %p67
    %p74 = scmp.eq.s32.totalorder %s11, 1
    %p75 = por %p73, %p74
    %p76 = scmp.ne.s32.totalorder %s68, %s71
    %p77 = scmp.eq.s32.totalorder %s11, 0
    %p78 = por %p76, %p77
    %p79 = scmp.ne.s32.totalorder %s68, %s71
    %p80 = scmp.eq.s32.totalorder %s16, 1
    %p81 = por %p79, %p80
    %p82 = scmp.ne.s32.totalorder %s71, %s72
    %p83 = scmp.eq.s32.totalorder %s16, 0
    %p84 = por %p82, %p83
    %p85 = scmp.ne.s32.totalorder %s71, %s72
    %p86 = scmp.eq.s32.totalorder %s17, 1
    %p87 = por %p85, %p86
    %p89 = scmp.ne.s32.totalorder %s72, %s88
    %p90 = scmp.eq.s32.totalorder %s17, 0
    %p91 = por %p89, %p90
    %s92 = ssub.s32 %s11, %s18
    %p93 = scmp.eq.s32.totalorder %s92, 0
    %s95 = sadd.s32 %s94, 1
    %s96 = scalar_select %p93, %s94, %s95
    %p99 = pneg %p93
    %p100 = scmp.eq.s32.totalorder %s11, 1
    %p101 = por %p99, %p100
    %p102 = scmp.ne.s32.totalorder %s94, %s97
    %p103 = scmp.eq.s32.totalorder %s11, 0
    %p104 = por %p102, %p103
    %p105 = scmp.ne.s32.totalorder %s94, %s97
    %p106 = scmp.eq.s32.totalorder %s16, 1
    %p107 = por %p105, %p106
    %p108 = scmp.ne.s32.totalorder %s97, %s98
    %p109 = scmp.eq.s32.totalorder %s16, 0
    %p110 = por %p108, %p109
    %p111 = scmp.ne.s32.totalorder %s97, %s98
    %p112 = scmp.eq.s32.totalorder %s17, 1
    %p113 = por %p111, %p112
    %p115 = scmp.ne.s32.totalorder %s98, %s114
    %p116 = scmp.eq.s32.totalorder %s17, 0
    %p117 = por %p115, %p116
    %s118 = ssub.s32 %s11, %s18
    %p119 = scmp.eq.s32.totalorder %s118, 0
    %s121 = sadd.s32 %s120, 1
    %s122 = scalar_select %p119, %s120, %s121
    %p125 = pneg %p119
    %p126 = scmp.eq.s32.totalorder %s11, 1
    %p127 = por %p125, %p126
    %p128 = scmp.ne.s32.totalorder %s120, %s123
    %p129 = scmp.eq.s32.totalorder %s11, 0
    %p130 = por %p128, %p129
    %p131 = scmp.ne.s32.totalorder %s120, %s123
    %p132 = scmp.eq.s32.totalorder %s16, 1
    %p133 = por %p131, %p132
    %p134 = scmp.ne.s32.totalorder %s123, %s124
    %p135 = scmp.eq.s32.totalorder %s16, 0
    %p136 = por %p134, %p135
    %p137 = scmp.ne.s32.totalorder %s123, %s124
    %p138 = scmp.eq.s32.totalorder %s17, 1
    %p139 = por %p137, %p138
    %p141 = scmp.ne.s32.totalorder %s124, %s140
    %p142 = scmp.eq.s32.totalorder %s17, 0
    %p143 = por %p141, %p142
    %p144 = scmp.le.s32.totalorder 1, %s11
    %p145 = scmp.lt.s32.totalorder %s11, 3
    %p146 = pnand %p144, %p145
    %p147 = pneg %p146
    // Predicated region
    $region9: #{upsample_block.2} parent=5 // pred_check
      _
    $region10: #{upsample_block.2} parent=5 // pred_check_branch
      %149 = sbr.rel (%p146) target = $region12
    $region11: #{upsample_block.2} parent=5 // pred_region
      %s150 = ssub.s32 %s11, 1
      // Predicated region
      $region13: #{upsample_block.2} parent=11 // pred_check
        %p151 = pneg %p58
      $region14: #{upsample_block.2} parent=11 // pred_check_branch
        %153 = sbr.rel (%p151) target = $region16
      $region15: #{upsample_block.2} parent=11 // pred_region
        _
      $region16: #{upsample_block.2} parent=11 // pred_fallthru
        _
    $region12: #{upsample_block.2} parent=5 // pred_fallthru
      _
    %p154 = scmp.lt.s32.totalorder %s11, 2
    // Predicated region
    $region17: #{upsample_block.2} parent=5 // pred_check
      %p155 = pneg %p154
    $region18: #{upsample_block.2} parent=5 // pred_check_branch
      %157 = sbr.rel (%p155) target = $region20
    $region19: #{upsample_block.2} parent=5 // pred_region
      // Predicated region
      $region21: #{upsample_block.2} parent=19 // pred_check
        %p158 = pneg %p31
      $region22: #{upsample_block.2} parent=19 // pred_check_branch
        %160 = sbr.rel (%p158) target = $region24
      $region23: #{upsample_block.2} parent=19 // pred_region
        %p161 = scmp.lt.s32.totalorder %s11, 1
        %s162 = scalar_select %p161, %s11, 1
        %s163 = smul.addr %s162, 10
        %s164 = smul.addr %s163, 8
        %s165 = scalar_lea.vmem %s0, %s164
      $region24: #{upsample_block.2} parent=19 // pred_fallthru
        _
    $region20: #{upsample_block.2} parent=5 // pred_fallthru
      _
    %p166 = scmp.le.s32.totalorder 1, %s11
    %p167 = scmp.lt.s32.totalorder %s11, 3
    %p168 = pnand %p166, %p167
    %p169 = pneg %p168
    // Predicated region
    $region25: #{upsample_block.2} parent=5 // pred_check
      _
    $region26: #{upsample_block.2} parent=5 // pred_check_branch
      %171 = sbr.rel (%p168) target = $region28
    $region27: #{upsample_block.2} parent=5 // pred_region
      %s172 = ssub.s32 %s11, 1
      %p173 = scmp.lt.s32.totalorder %s16, 1
      %s174 = scalar_select %p173, %s16, 1
      %s175 = smul.addr %s174, 10
      %s176 = smul.addr %s175, 8
      %s177 = scalar_lea.vmem %s0, %s176
      %p178 = pneg %p37
      %p179 = pneg %p34
      %p180 = pneg %p58
      %p181 = pneg %p55
      %p182 = pneg %p84
      %p183 = pneg %p81
      %p184 = scmp.lt.s32.totalorder %s16, 1
      %s185 = scalar_select %p184, %s16, 1
      %s186 = smul.addr %s185, 2
      %s187 = smul.addr %s186, 8
      %s188 = scalar_lea.vmem %s2, %s187
      %p189 = pneg %p110
      %p190 = pneg %p107
      %p191 = scmp.lt.s32.totalorder %s16, 1
      %s192 = scalar_select %p191, %s16, 1
      %s193 = smul.addr %s192, 8
      %s194 = scalar_lea.vmem %s3, %s193
      %p195 = pneg %p136
      %p196 = pneg %p133
      %p197 = scmp.lt.s32.totalorder %s16, 1
      %s198 = scalar_select %p197, %s16, 1
      %s199 = smul.addr %s198, 8
      %s200 = scalar_lea.vmem %s4, %s199
      %p201 = scmp.lt.s32.totalorder %s16, 1
      %s202 = scalar_select %p201, %s16, 1
      %s203 = smul.addr %s202, 10
      %s204 = smul.addr %s203, 8
      %s205 = scalar_lea.vmem %s0, %s204
      %p206 = scmp.lt.s32.totalorder %s16, 1
      %s207 = scalar_select %p206, %s16, 1
      %s208 = smul.addr %s207, 2
      %s209 = smul.addr %s208, 8
      %s210 = scalar_lea.vmem %s2, %s209
      %p211 = scmp.lt.s32.totalorder %s16, 1
      %s212 = scalar_select %p211, %s16, 1
      %s213 = smul.addr %s212, 8
      %s214 = scalar_lea.vmem %s3, %s213
      %p215 = scmp.lt.s32.totalorder %s16, 1
      %s216 = scalar_select %p215, %s16, 1
      %s217 = smul.addr %s216, 8
      %s218 = scalar_lea.vmem %s4, %s217
      %v219 = vld [vmem:[%s205] sm:$0xff]
      %v220 = vld [vmem:[%s205 + $0x8] sm:$0xff]
      %v221 = vld [vmem:[%s205 + $0x10] sm:$0xff]
      %v222 = vld [vmem:[%s205 + $0x18] sm:$0xff]
      %v223 = vld [vmem:[%s205 + $0x20] sm:$0xff]
      %v224 = vld [vmem:[%s205 + $0x28] sm:$0xff]
      %v225 = vld [vmem:[%s205 + $0x30] sm:$0xff]
      %v226 = vld [vmem:[%s205 + $0x38] sm:$0xff]
      %v227 = vld [vmem:[%s205 + $0x40] sm:$0xf]
      %v228 = vld [vmem:[%s205 + $0x48] sm:$0xf]
      %v229 = vld [vmem:[%s1] sm:$0xff]
      %vm230 = vcmask 293888
      %v232 = vsel %vm230, %v229, 0
      %vm234 = vcmask 1043456
      %v236 = vsel %vm234, %v227, 0
      %v239 = vsel %vm234, %v228, 0
      %241 = vmatprep.subr.mxu0 0.0
      %242 = vmatpush1.msra.mxu0 0.0
      %243 = vmatprep.subr.mxu0 0.0
      %244 = vmatpush1.msra.mxu0 0.0
      %245 = vmatprep.subr.mxu0 0.0
      %246 = vmatpush1.msra.mxu0 0.0
      %247 = vmatprep.subr.mxu0 0.0
      %248 = vmatpush1.msra.mxu0 0.0
      %249 = vmatprep.subr.mxu0 0.0
      %250 = vmatpush1.msra.mxu0 0.0
      %251 = vmatprep.subr.mxu0 0.0
      %252 = vmatpush1.msra.mxu0 0.0
      %253 = vmatprep.subr.mxu0 0.0
      %254 = vmatpush1.msra.mxu0 0.0
      %255 = vmatprep.subr.mxu0 0.0
      %256 = vmatpush1.msra.mxu0 0.0
      %257 = vmatprep.subr.mxu0 0.0
      %258 = vmatpush1.msra.mxu0 0.0
      %259 = vmatprep.subr.mxu0 0.0
      %260 = vmatpush1.msra.mxu0 0.0
      %261 = vmatprep.subr.mxu0 0.0
      %262 = vmatpush1.msra.mxu0 0.0
      %263 = vmatprep.subr.mxu0 %v239
      %264 = vmatpush1.msra.mxu0 %v236
      %265 = vmatprep.subr.mxu0 %v226
      %266 = vmatpush1.msra.mxu0 %v225
      %267 = vmatprep.subr.mxu0 %v224
      %268 = vmatpush1.msra.mxu0 %v223
      %269 = vmatprep.subr.mxu0 %v222
      %270 = vmatpush1.msra.mxu0 %v221
      %271 = vmatprep.subr.mxu0 %v220
      %272 = vmatpush1.msra.mxu0 %v219
      %273 = vmatprep.subr.mxu0 0.0
      %274 = vmatpush2.msra.mxu0 0.0
      %275 = vmatprep.subr.mxu0 0.0
      %276 = vmatpush2.msra.mxu0 0.0
      %277 = vmatprep.subr.mxu0 0.0
      %278 = vmatpush2.msra.mxu0 0.0
      %279 = vmatprep.subr.mxu0 0.0
      %280 = vmatpush2.msra.mxu0 0.0
      %281 = vmatprep.subr.mxu0 0.0
      %282 = vmatpush2.msra.mxu0 0.0
      %283 = vmatprep.subr.mxu0 0.0
      %284 = vmatpush2.msra.mxu0 0.0
      %285 = vmatprep.subr.mxu0 0.0
      %286 = vmatpush2.msra.mxu0 0.0
      %287 = vmatprep.subr.mxu0 0.0
      %288 = vmatpush2.msra.mxu0 0.0
      %289 = vmatprep.subr.mxu0 0.0
      %290 = vmatpush2.msra.mxu0 0.0
      %291 = vmatprep.subr.mxu0 0.0
      %292 = vmatpush2.msra.mxu0 0.0
      %293 = vmatprep.subr.mxu0 0.0
      %294 = vmatpush2.msra.mxu0 0.0
      %295 = vmatprep.subr.mxu0 0.0
      %296 = vmatpush2.msra.mxu0 0.0
      %297 = vmatprep.subr.mxu0 0.0
      %298 = vmatpush2.msra.mxu0 0.0
      %299 = vmatprep.subr.mxu0 0.0
      %300 = vmatpush2.msra.mxu0 0.0
      %301 = vmatprep.subr.mxu0 0.0
      %302 = vmatpush2.msra.mxu0 0.0
      %303 = vmatprep.subr.mxu0 0.0
      %304 = vmatpush2.msra.mxu0 0.0
      %305 = vmatprep.mubr.f32.mxu0 0.0
      %306 = vmatmul.mubr.f32.gmra.mxu0 %v232
      %v307 = vpop.f32.mrf.mxu0
      %v308 = vadd.f32 0.0, %v307
      %v309 = vpop.f32.mrf.mxu0
      %v310 = vadd.f32 0.0, %v309
      %311 = vdwg.mxu0
      %312 = vst [vmem:[%s210] sm:$0xff] %v308
      %313 = vst [vmem:[%s210 + $0x8] sm:$0xff] %v310
      %v314 = vadd.f32 %v308, %v310
      %315 = vadd.xlane.f32.xlu0 %v314
      %v316 = vpop.xlane.xlu0 %315
      %vm317 = vcmask 7168
      %318 = vst.msk [vmem:[%s214] sm:$0xff] %vm317, %v316
      %v319 = vmul.f32 %v308, %v308
      %v320 = vmul.f32 %v310, %v310
      %v321 = vadd.f32 %v319, %v320
      %322 = vadd.xlane.f32.xlu0 %v321
      %v323 = vpop.xlane.xlu0 %322
      %324 = vst.msk [vmem:[%s218] sm:$0xff] %vm317, %v323
      %p325 = scmp.lt.s32.totalorder %s16, 1
      %s326 = scalar_select %p325, %s16, 1
      %s327 = smul.addr %s326, 2
      %s328 = smul.addr %s327, 8
      %s329 = scalar_lea.vmem %s2, %s328
      %p330 = scmp.lt.s32.totalorder %s16, 1
      %s331 = scalar_select %p330, %s16, 1
      %s332 = smul.addr %s331, 8
      %s333 = scalar_lea.vmem %s3, %s332
      %p334 = scmp.lt.s32.totalorder %s16, 1
      %s335 = scalar_select %p334, %s16, 1
      %s336 = smul.addr %s335, 8
      %s337 = scalar_lea.vmem %s4, %s336
      // Predicated region
      $region29: #{upsample_block.2} parent=27 // pred_check
        %p338 = pneg %p81
      $region30: #{upsample_block.2} parent=27 // pred_check_branch
        %340 = sbr.rel (%p338) target = $region32
      $region31: #{upsample_block.2} parent=27 // pred_region
        _
      $region32: #{upsample_block.2} parent=27 // pred_fallthru
        _
      // Predicated region
      $region33: #{upsample_block.2} parent=27 // pred_check
        %p341 = pneg %p107
      $region34: #{upsample_block.2} parent=27 // pred_check_branch
        %343 = sbr.rel (%p341) target = $region36
      $region35: #{upsample_block.2} parent=27 // pred_region
        _
      $region36: #{upsample_block.2} parent=27 // pred_fallthru
        _
      // Predicated region
      $region37: #{upsample_block.2} parent=27 // pred_check
        %p344 = pneg %p133
      $region38: #{upsample_block.2} parent=27 // pred_check_branch
        %346 = sbr.rel (%p344) target = $region40
      $region39: #{upsample_block.2} parent=27 // pred_region
        _
      $region40: #{upsample_block.2} parent=27 // pred_fallthru
        _
    $region28: #{upsample_block.2} parent=5 // pred_fallthru
      _
    %p347 = scmp.le.s32.totalorder 2, %s11
    // Predicated region
    $region41: #{upsample_block.2} parent=5 // pred_check
      %p348 = pneg %p347
    $region42: #{upsample_block.2} parent=5 // pred_check_branch
      %350 = sbr.rel (%p348) target = $region44
    $region43: #{upsample_block.2} parent=5 // pred_region
      %s351 = ssub.s32 %s11, 2
      // Predicated region
      $region45: #{upsample_block.2} parent=43 // pred_check
        %p352 = pneg %p87
      $region46: #{upsample_block.2} parent=43 // pred_check_branch
        %354 = sbr.rel (%p352) target = $region48
      $region47: #{upsample_block.2} parent=43 // pred_region
        %p355 = scmp.lt.s32.totalorder %s17, 1
        %s356 = scalar_select %p355, %s17, 1
        %s357 = smul.addr %s356, 2
        %s358 = smul.addr %s357, 8
        %s359 = scalar_lea.vmem %s2, %s358
      $region48: #{upsample_block.2} parent=43 // pred_fallthru
        _
      // Predicated region
      $region49: #{upsample_block.2} parent=43 // pred_check
        %p360 = pneg %p113
      $region50: #{upsample_block.2} parent=43 // pred_check_branch
        %362 = sbr.rel (%p360) target = $region52
      $region51: #{upsample_block.2} parent=43 // pred_region
        %p363 = scmp.lt.s32.totalorder %s17, 1
        %s364 = scalar_select %p363, %s17, 1
        %s365 = smul.addr %s364, 8
        %s366 = scalar_lea.vmem %s3, %s365
      $region52: #{upsample_block.2} parent=43 // pred_fallthru
        _
      // Predicated region
      $region53: #{upsample_block.2} parent=43 // pred_check
        %p367 = pneg %p139
      $region54: #{upsample_block.2} parent=43 // pred_check_branch
        %369 = sbr.rel (%p367) target = $region56
      $region55: #{upsample_block.2} parent=43 // pred_region
        %p370 = scmp.lt.s32.totalorder %s17, 1
        %s371 = scalar_select %p370, %s17, 1
        %s372 = smul.addr %s371, 8
        %s373 = scalar_lea.vmem %s4, %s372
      $region56: #{upsample_block.2} parent=43 // pred_fallthru
        _
    $region44: #{upsample_block.2} parent=5 // pred_fallthru
      _
  $region6: #{upsample_block.2} parent=0 // loop_footer
    %s15 = sadd.s32 1, %s11
  $region7: #{upsample_block.2} parent=0 // loop_footer_branch
    %10 = sbr.rel target = $region3
  $region8: #{upsample_block.2} parent=0 // loop_exit
    _

// kernel: upsample_block.3
$region0: #{upsample_block.3}
  #allocation0 [shape = 'u32[]', space=smem, size = 0x4, offset = 0x4, fixed_abs, tag = 'smem constant byte address 0x4 - core index']
  #allocation1 [shape = 'u32[144,128]{1,0:T(1,128)}', space=vmem, size = 0x12000, scoped, tag = 'internal scratch']
  %s0 = inlined_call_operand.vmem [shape: f32[2,8,256], index: 0, kind: input, shape index: {}, may-alias: {0,3}]
  %s1 = inlined_call_operand.vmem [shape: f32[8,1], index: 1, kind: input, shape index: {}]
  %s2 = inlined_call_operand.vmem [shape: f32[8,1], index: 2, kind: input, shape index: {}]
  %s3 = inlined_call_operand.vmem [shape: f32[2,8,256], index: 3, kind: output, shape index: {}, may-alias: {0,3}]
  %s4 = sld [smem:[#allocation0]]
  $region45: #{upsample_block.3} parent=0
    _
  %s6 = ssub.s32 1, %s4
  %s7 = scalar_select 0, %s6, %s4
  loop: start=0, step=1, limit=4
  $region2: #{upsample_block.3} parent=0 // loop_pre_header
    _
  $region3: #{upsample_block.3} parent=0 // loop_header
    %s9 = sphi 0, %s13
    %p10 = scmp.ge.s32.totalorder %s9, 4
    %s19 = sphi 0, %s21
    %s22 = sphi 0, %s19
    %s23 = sphi 0, %s22
    %s39 = sphi 0, %s23
    %s43 = sphi 0, %s43
    %s45 = sphi 0, %s43
    %s46 = sphi 0, %s45
    %s60 = sphi 0, %s46
    %s64 = sphi 0, %s64
    %s66 = sphi 0, %s64
    %s67 = sphi 0, %s66
    %s81 = sphi 0, %s67
    %s87 = sphi 0, %s89
    %s90 = sphi 0, %s87
    %s91 = sphi 0, %s90
    %s107 = sphi 0, %s91
  $region4: #{upsample_block.3} parent=0 // loop_header_branch
    %12 = sbr.rel (%p10) target = $region8
  $region5: #{upsample_block.3} parent=0 // loop_body
    %s14 = ssub.s32 %s9, 1
    %s15 = ssub.s32 %s9, 2
    %s16 = sadd.s32 %s9, 1
    %s17 = ssub.s32 %s9, %s16
    %p18 = scmp.eq.s32.totalorder %s17, 0
    %s20 = sadd.s32 %s19, 1
    %s21 = scalar_select %p18, %s19, %s20
    %p24 = pneg %p18
    %p25 = scmp.eq.s32.totalorder %s9, 1
    %p26 = por %p24, %p25
    %p27 = scmp.ne.s32.totalorder %s19, %s22
    %p28 = scmp.eq.s32.totalorder %s9, 0
    %p29 = por %p27, %p28
    %p30 = scmp.ne.s32.totalorder %s19, %s22
    %p31 = scmp.eq.s32.totalorder %s14, 1
    %p32 = por %p30, %p31
    %p33 = scmp.ne.s32.totalorder %s22, %s23
    %p34 = scmp.eq.s32.totalorder %s14, 0
    %p35 = por %p33, %p34
    %p36 = scmp.ne.s32.totalorder %s22, %s23
    %p37 = scmp.eq.s32.totalorder %s15, 1
    %p38 = por %p36, %p37
    %p40 = scmp.ne.s32.totalorder %s23, %s39
    %p41 = scmp.eq.s32.totalorder %s15, 0
    %p42 = por %p40, %p41
    %s44 = sadd.s32 %s43, 1
    %p47 = scmp.eq.s32.totalorder %s9, 1
    %p48 = scmp.ne.s32.totalorder %s43, %s45
    %p49 = scmp.eq.s32.totalorder %s9, 0
    %p50 = por %p48, %p49
    %p51 = scmp.ne.s32.totalorder %s43, %s45
    %p52 = scmp.eq.s32.totalorder %s14, 1
    %p53 = por %p51, %p52
    %p54 = scmp.ne.s32.totalorder %s45, %s46
    %p55 = scmp.eq.s32.totalorder %s14, 0
    %p56 = por %p54, %p55
    %p57 = scmp.ne.s32.totalorder %s45, %s46
    %p58 = scmp.eq.s32.totalorder %s15, 1
    %p59 = por %p57, %p58
    %p61 = scmp.ne.s32.totalorder %s46, %s60
    %p62 = scmp.eq.s32.totalorder %s15, 0
    %p63 = por %p61, %p62
    %s65 = sadd.s32 %s64, 1
    %p68 = scmp.eq.s32.totalorder %s9, 1
    %p69 = scmp.ne.s32.totalorder %s64, %s66
    %p70 = scmp.eq.s32.totalorder %s9, 0
    %p71 = por %p69, %p70
    %p72 = scmp.ne.s32.totalorder %s64, %s66
    %p73 = scmp.eq.s32.totalorder %s14, 1
    %p74 = por %p72, %p73
    %p75 = scmp.ne.s32.totalorder %s66, %s67
    %p76 = scmp.eq.s32.totalorder %s14, 0
    %p77 = por %p75, %p76
    %p78 = scmp.ne.s32.totalorder %s66, %s67
    %p79 = scmp.eq.s32.totalorder %s15, 1
    %p80 = por %p78, %p79
    %p82 = scmp.ne.s32.totalorder %s67, %s81
    %p83 = scmp.eq.s32.totalorder %s15, 0
    %p84 = por %p82, %p83
    %s85 = ssub.s32 %s9, %s16
    %p86 = scmp.eq.s32.totalorder %s85, 0
    %s88 = sadd.s32 %s87, 1
    %s89 = scalar_select %p86, %s87, %s88
    %p92 = pneg %p86
    %p93 = scmp.eq.s32.totalorder %s9, 1
    %p94 = por %p92, %p93
    %p95 = scmp.ne.s32.totalorder %s87, %s90
    %p96 = scmp.eq.s32.totalorder %s9, 0
    %p97 = por %p95, %p96
    %p98 = scmp.ne.s32.totalorder %s87, %s90
    %p99 = scmp.eq.s32.totalorder %s14, 1
    %p100 = por %p98, %p99
    %p101 = scmp.ne.s32.totalorder %s90, %s91
    %p102 = scmp.eq.s32.totalorder %s14, 0
    %p103 = por %p101, %p102
    %p104 = scmp.ne.s32.totalorder %s90, %s91
    %p105 = scmp.eq.s32.totalorder %s15, 1
    %p106 = por %p104, %p105
    %p108 = scmp.ne.s32.totalorder %s91, %s107
    %p109 = scmp.eq.s32.totalorder %s15, 0
    %p110 = por %p108, %p109
    %p111 = scmp.le.s32.totalorder 1, %s9
    %p112 = scmp.lt.s32.totalorder %s9, 3
    %p113 = pnand %p111, %p112
    %p114 = pneg %p113
    // Predicated region
    $region9: #{upsample_block.3} parent=5 // pred_check
      _
    $region10: #{upsample_block.3} parent=5 // pred_check_branch
      %116 = sbr.rel (%p113) target = $region12
    $region11: #{upsample_block.3} parent=5 // pred_region
      %s117 = ssub.s32 %s9, 1
      // Predicated region
      $region13: #{upsample_block.3} parent=11 // pred_check
        %p118 = pneg %p56
      $region14: #{upsample_block.3} parent=11 // pred_check_branch
        %120 = sbr.rel (%p118) target = $region16
      $region15: #{upsample_block.3} parent=11 // pred_region
        _
      $region16: #{upsample_block.3} parent=11 // pred_fallthru
        _
      // Predicated region
      $region17: #{upsample_block.3} parent=11 // pred_check
        %p121 = pneg %p77
      $region18: #{upsample_block.3} parent=11 // pred_check_branch
        %123 = sbr.rel (%p121) target = $region20
      $region19: #{upsample_block.3} parent=11 // pred_region
        _
      $region20: #{upsample_block.3} parent=11 // pred_fallthru
        _
    $region12: #{upsample_block.3} parent=5 // pred_fallthru
      _
    %p124 = scmp.lt.s32.totalorder %s9, 2
    // Predicated region
    $region21: #{upsample_block.3} parent=5 // pred_check
      %p125 = pneg %p124
    $region22: #{upsample_block.3} parent=5 // pred_check_branch
      %127 = sbr.rel (%p125) target = $region24
    $region23: #{upsample_block.3} parent=5 // pred_region
      // Predicated region
      $region25: #{upsample_block.3} parent=23 // pred_check
        %p128 = pneg %p29
      $region26: #{upsample_block.3} parent=23 // pred_check_branch
        %130 = sbr.rel (%p128) target = $region28
      $region27: #{upsample_block.3} parent=23 // pred_region
        %p131 = scmp.lt.s32.totalorder %s9, 1
        %s132 = scalar_select %p131, %s9, 1
        %s133 = smul.addr %s132, 2
        %s134 = smul.addr %s133, 8
        %s135 = scalar_lea.vmem %s0, %s134
      $region28: #{upsample_block.3} parent=23 // pred_fallthru
        _
    $region24: #{upsample_block.3} parent=5 // pred_fallthru
      _
    %p136 = scmp.le.s32.totalorder 1, %s9
    %p137 = scmp.lt.s32.totalorder %s9, 3
    %p138 = pnand %p136, %p137
    %p139 = pneg %p138
    // Predicated region
    $region29: #{upsample_block.3} parent=5 // pred_check
      _
    $region30: #{upsample_block.3} parent=5 // pred_check_branch
      %141 = sbr.rel (%p138) target = $region32
    $region31: #{upsample_block.3} parent=5 // pred_region
      %s142 = ssub.s32 %s9, 1
      %p143 = scmp.lt.s32.totalorder %s14, 1
      %s144 = scalar_select %p143, %s14, 1
      %s145 = smul.addr %s144, 2
      %s146 = smul.addr %s145, 8
      %s147 = scalar_lea.vmem %s0, %s146
      %p148 = pneg %p35
      %p149 = pneg %p32
      %p150 = pneg %p56
      %p151 = pneg %p53
      %p152 = pneg %p77
      %p153 = pneg %p74
      %p154 = pneg %p103
      %p155 = pneg %p100
      %p156 = scmp.lt.s32.totalorder %s14, 1
      %s157 = scalar_select %p156, %s14, 1
      %s158 = smul.addr %s157, 2
      %s159 = smul.addr %s158, 8
      %s160 = scalar_lea.vmem %s3, %s159
      %p161 = scmp.lt.s32.totalorder %s14, 1
      %s162 = scalar_select %p161, %s14, 1
      %s163 = smul.addr %s162, 2
      %s164 = smul.addr %s163, 8
      %s165 = scalar_lea.vmem %s0, %s164
      %p166 = scmp.lt.s32.totalorder %s14, 1
      %s167 = scalar_select %p166, %s14, 1
      %s168 = smul.addr %s167, 2
      %s169 = smul.addr %s168, 8
      %s170 = scalar_lea.vmem %s3, %s169
      %v171 = vld [vmem:[%s165] sm:$0xff]
      %v172 = vld [vmem:[%s165 + $0x8] sm:$0xff]
      %v173 = vld [vmem:[%s1] sm:$0xff]
      %175 = vset.pattern.permute.xlu0 0
      %176 = vperm.xlu0 %175, %v173
      %v177 = vpop.permute.xlu0 %176
      %v179 = vmul.f32 %v171, %v177
      %v180 = vmul.f32 %v172, %v177
      %v181 = vld [vmem:[%s2] sm:$0xff]
      %183 = vset.pattern.permute.xlu0 0
      %184 = vperm.xlu0 %183, %v181
      %v185 = vpop.permute.xlu0 %184
      %v187 = vadd.f32 %v179, %v185
      %v188 = vadd.f32 %v180, %v185
      %v189 = vmax.f32 %v187, 0.0
      %v190 = vmax.f32 %v188, 0.0
      %191 = vst [vmem:[%s170] sm:$0xff] %v189
      %192 = vst [vmem:[%s170 + $0x8] sm:$0xff] %v190
      %p193 = scmp.lt.s32.totalorder %s14, 1
      %s194 = scalar_select %p193, %s14, 1
      %s195 = smul.addr %s194, 2
      %s196 = smul.addr %s195, 8
      %s197 = scalar_lea.vmem %s3, %s196
      // Predicated region
      $region33: #{upsample_block.3} parent=31 // pred_check
        %p198 = pneg %p100
      $region34: #{upsample_block.3} parent=31 // pred_check_branch
        %200 = sbr.rel (%p198) target = $region36
      $region35: #{upsample_block.3} parent=31 // pred_region
        _
      $region36: #{upsample_block.3} parent=31 // pred_fallthru
        _
    $region32: #{upsample_block.3} parent=5 // pred_fallthru
      _
    %p201 = scmp.le.s32.totalorder 2, %s9
    // Predicated region
    $region37: #{upsample_block.3} parent=5 // pred_check
      %p202 = pneg %p201
    $region38: #{upsample_block.3} parent=5 // pred_check_branch
      %204 = sbr.rel (%p202) target = $region40
    $region39: #{upsample_block.3} parent=5 // pred_region
      %s205 = ssub.s32 %s9, 2
      // Predicated region
      $region41: #{upsample_block.3} parent=39 // pred_check
        %p206 = pneg %p106
      $region42: #{upsample_block.3} parent=39 // pred_check_branch
        %208 = sbr.rel (%p206) target = $region44
      $region43: #{upsample_block.3} parent=39 // pred_region
        %p209 = scmp.lt.s32.totalorder %s15, 1
        %s210 = scalar_select %p209, %s15, 1
        %s211 = smul.addr %s210, 2
        %s212 = smul.addr %s211, 8
        %s213 = scalar_lea.vmem %s3, %s212
      $region44: #{upsample_block.3} parent=39 // pred_fallthru
        _
    $region40: #{upsample_block.3} parent=5 // pred_fallthru
      _
  $region6: #{upsample_block.3} parent=0 // loop_footer
    %s13 = sadd.s32 1, %s9
  $region7: #{upsample_block.3} parent=0 // loop_footer_branch
    %8 = sbr.rel target = $region3
  $region8: #{upsample_block.3} parent=0 // loop_exit
    _

</llo_original>
